<compile_context>
chip_gen: v6e
topology: v6e:2x2x1
jax: 0.10.0
libtpu: 0.0.40
codegen_flags: <defaults>
</compile_context>

<pallas_src>
import jax
import jax.numpy as jnp
from jax.experimental import pallas as pl
from jax.experimental.pallas import tpu as pltpu


# ----------------------------------------------------------------------------
# Pallas kernel: one shot, everything VMEM-resident.
#   a_ref : [N,   N  ]  bf16  normalized adjacency (shared across the batch)
#   x_ref : [N,  B*H ]  bf16  node features, environments stacked along lanes
#   w_ref : [B*H, B*H]  bf16  block-diagonal kron(I_B, W)
#   b_ref : [1,  B*H ]  f32   bias tiled per environment
#   o_ref : [N,  B*H ]  f32   relu(A @ X @ W_bd + b)   (lane-dense, 128 wide)
# ----------------------------------------------------------------------------
def gcn_batched_kernel(a_ref, x_ref, w_ref, b_ref, o_ref):
    # Neighborhood aggregation for all environments at once (shared A).
    agg = jnp.dot(a_ref[...], x_ref[...], preferred_element_type=jnp.float32)
    # Per-environment linear layer via the block-diagonal weight: one MXU pass.
    out = jnp.dot(agg.astype(jnp.bfloat16), w_ref[...],
                  preferred_element_type=jnp.float32)
    # Epilogue stays in f32 (bias + ReLU on the f32 accumulator).
    out = out + b_ref[...]
    o_ref[...] = jnp.maximum(out, 0.0).astype(o_ref.dtype)


def map_embedding_block(x_batched, a_norm, w, b):
    """relu(GCNConv(x_b)) for a batch of environments sharing one graph.

    x_batched : [B, N, H] node features for B environments
    a_norm    : [N, N]    dense normalized adjacency D^-1/2 (A+I) D^-1/2
    w         : [H, H]    GCN linear weight
    b         : [H]       bias
    returns   : [B, N, H] f32
    """
    bsz, n, h = x_batched.shape
    bh = bsz * h

    # Lane-dense stacking: [B, N, H] -> [N, B*H] (layout plumbing only).
    x_flat = jnp.transpose(x_batched, (1, 0, 2)).reshape(n, bh)
    # Block-diagonal weight so a single matmul applies W to every environment.
    w_big = jnp.kron(jnp.eye(bsz, dtype=w.dtype), w)
    b_big = jnp.tile(b, bsz).reshape(1, bh).astype(jnp.float32)

    flops = 2 * n * n * bh + 2 * n * bh * bh
    bytes_accessed = 2 * (n * n + n * bh + bh * bh) + 4 * (bh + n * bh)

    out_flat = pl.pallas_call(
        gcn_batched_kernel,
        out_shape=jax.ShapeDtypeStruct((n, bh), jnp.float32),
        grid=(1,),
        in_specs=[
            pl.BlockSpec((n, n), lambda i: (0, 0)),     # adjacency (full)
            pl.BlockSpec((n, bh), lambda i: (0, 0)),    # stacked features
            pl.BlockSpec((bh, bh), lambda i: (0, 0)),   # block-diag weight
            pl.BlockSpec((1, bh), lambda i: (0, 0)),    # bias
        ],
        out_specs=pl.BlockSpec((n, bh), lambda i: (0, 0)),
        compiler_params=pltpu.CompilerParams(
            dimension_semantics=("arbitrary",)),
        cost_estimate=pl.CostEstimate(
            flops=int(flops), transcendentals=0,
            bytes_accessed=int(bytes_accessed)),
    )(a_norm.astype(jnp.bfloat16), x_flat.astype(jnp.bfloat16),
      w_big.astype(jnp.bfloat16), b_big)

    # Back to [B, N, H].
    return jnp.transpose(out_flat.reshape(n, bsz, h), (1, 0, 2))


# ----------------------------------------------------------------------------
# Glue: dense normalized adjacency D^{-1/2}(A+I)D^{-1/2} from edge_index.
# ----------------------------------------------------------------------------
def build_norm_adj(edge_index, num_nodes):
    src, dst = edge_index[0], edge_index[1]
    loops = jnp.arange(num_nodes, dtype=edge_index.dtype)
    src = jnp.concatenate([src, loops])
    dst = jnp.concatenate([dst, loops])
    adj = jnp.zeros((num_nodes, num_nodes), jnp.float32).at[dst, src].add(1.0)
    deg = adj.sum(axis=1)
    d_inv_sqrt = jnp.where(deg > 0, 1.0 / jnp.sqrt(deg), 0.0)
    return d_inv_sqrt[:, None] * adj * d_inv_sqrt[None, :]


def grid_edge_index(side):
    """4-neighborhood bidirectional grid graph for a side x side map."""
    idx = jnp.arange(side * side).reshape(side, side)
    right = jnp.stack([idx[:, :-1].reshape(-1), idx[:, 1:].reshape(-1)])
    down = jnp.stack([idx[:-1, :].reshape(-1), idx[1:, :].reshape(-1)])
    e = jnp.concatenate([right, down], axis=1)
    e = jnp.concatenate([e, e[::-1]], axis=1)  # make bidirectional
    return e.astype(jnp.int32)


# Pure-JAX f32 reference for correctness checking.
def reference(x_batched, a_norm, w, b):
    agg = jnp.einsum("nm,bmh->bnh", a_norm, x_batched)
    return jnp.maximum(agg @ w + b[None, None, :], 0.0)


if __name__ == "__main__":
    key = jax.random.PRNGKey(0)
    k_x, k_w = jax.random.split(key)

    side = 8                       # 8x8 map -> N = 64 nodes
    num_nodes = side * side
    hidden_dim = 32
    batch = 4                      # 4 envs -> lane-dense B*H = 128 output

    # Node features ("map_tensor" per env, flattened to [N, H]) and edges.
    x = jax.random.normal(k_x, (batch, num_nodes, hidden_dim),
                          dtype=jnp.float32)
    edge_index = grid_edge_index(side)

    # Deterministic parameter init (Glorot-uniform weight, zero bias -- same
    # scheme as PyG GCNConv; synthetic weights, no checkpoint load).
    limit = jnp.sqrt(6.0 / (hidden_dim + hidden_dim))
    w = jax.random.uniform(k_w, (hidden_dim, hidden_dim),
                           minval=-limit, maxval=limit, dtype=jnp.float32)
    b = jnp.zeros((hidden_dim,), jnp.float32)

    a_norm = build_norm_adj(edge_index, num_nodes)

    out = map_embedding_block(x, a_norm, w, b)
    out = jax.block_until_ready(out)

    ref = reference(x, a_norm, w, b)
    assert out.shape == (batch, num_nodes, hidden_dim)
    # bf16 matmul operands -> loosened tolerance vs the f32 reference.
    assert jnp.allclose(out, ref, atol=5e-2, rtol=5e-2), \
        float(jnp.max(jnp.abs(out - ref)))

    print("KERNEL_OK")
</pallas_src>

<mosaic_0001>
module attributes {stable_mosaic.version = 11 : i64} {
  func.func @gcn_batched_kernel(%arg0: i32, %arg1: memref<64x64xbf16, #tpu.memory_space<vmem>>, %arg2: memref<64x128xbf16, #tpu.memory_space<vmem>>, %arg3: memref<128x128xbf16, #tpu.memory_space<vmem>>, %arg4: memref<1x128xf32, #tpu.memory_space<vmem>>, %arg5: memref<64x128xf32, #tpu.memory_space<vmem>>) attributes {dimension_semantics = [#tpu.dimension_semantics<arbitrary>], iteration_bounds = array<i64: 1>, scalar_prefetch = 0 : i64, scratch_operands = 0 : i64, tpu.core_type = #tpu.core_type<tc>, window_params = [{pipeline_mode = #tpu.pipeline_mode<synchronous>, transform_indices = @transform_0, window_bounds = array<i64: 64, 64>}, {pipeline_mode = #tpu.pipeline_mode<synchronous>, transform_indices = @transform_1, window_bounds = array<i64: 64, 128>}, {pipeline_mode = #tpu.pipeline_mode<synchronous>, transform_indices = @transform_2, window_bounds = array<i64: 128, 128>}, {pipeline_mode = #tpu.pipeline_mode<synchronous>, transform_indices = @transform_3, window_bounds = array<i64: 1, 128>}, {pipeline_mode = #tpu.pipeline_mode<synchronous>, transform_indices = @transform_4, window_bounds = array<i64: 64, 128>}]} {
    %c0 = arith.constant 0 : index
    %c0_0 = arith.constant 0 : index
    %0 = vector.load %arg1[%c0, %c0_0] : memref<64x64xbf16, #tpu.memory_space<vmem>>, vector<64x64xbf16>
    %c0_1 = arith.constant 0 : index
    %c0_2 = arith.constant 0 : index
    %1 = vector.load %arg2[%c0_1, %c0_2] : memref<64x128xbf16, #tpu.memory_space<vmem>>, vector<64x128xbf16>
    %cst = arith.constant dense<0.000000e+00> : vector<64x128xf32>
    %2 = tpu.matmul %0, %1, %cst {dimension_numbers = #tpu.dot_dimension_numbers<[1], [0], [0], [1], [0, 0, 1, 1], [], []>} : vector<64x64xbf16>, vector<64x128xbf16>, vector<64x128xf32> -> vector<64x128xf32>
    %3 = arith.truncf %2 : vector<64x128xf32> to vector<64x128xbf16>
    %c0_3 = arith.constant 0 : index
    %c0_4 = arith.constant 0 : index
    %4 = vector.load %arg3[%c0_3, %c0_4] : memref<128x128xbf16, #tpu.memory_space<vmem>>, vector<128x128xbf16>
    %cst_5 = arith.constant dense<0.000000e+00> : vector<64x128xf32>
    %5 = tpu.matmul %3, %4, %cst_5 {dimension_numbers = #tpu.dot_dimension_numbers<[1], [0], [0], [1], [0, 0, 1, 1], [], []>} : vector<64x128xbf16>, vector<128x128xbf16>, vector<64x128xf32> -> vector<64x128xf32>
    %c0_6 = arith.constant 0 : index
    %c0_7 = arith.constant 0 : index
    %6 = vector.load %arg4[%c0_6, %c0_7] : memref<1x128xf32, #tpu.memory_space<vmem>>, vector<1x128xf32>
    %7 = vector.broadcast %6 : vector<1x128xf32> to vector<64x128xf32>
    %8 = arith.addf %5, %7 : vector<64x128xf32>
    %cst_8 = arith.constant 0.000000e+00 : f32
    %9 = vector.broadcast %cst_8 : f32 to vector<64x128xf32>
    %10 = arith.maximumf %8, %9 : vector<64x128xf32>
    %c0_9 = arith.constant 0 : index
    %c0_10 = arith.constant 0 : index
    %11 = vector.load %arg5[%c0_9, %c0_10] : memref<64x128xf32, #tpu.memory_space<vmem>>, vector<64x128xf32>
    tpu.vector_store %arg5[%c0_9, %c0_10], %10 {strides = array<i32>} : memref<64x128xf32, #tpu.memory_space<vmem>>, vector<64x128xf32>,
    return
  }
  func.func @transform_0(%arg0: i32) -> (i32, i32) {
    %c0_i32 = arith.constant 0 : i32
    %c0_i32_0 = arith.constant 0 : i32
    %c0_i32_1 = arith.constant 0 : i32
    return %c0_i32, %c0_i32_0 : i32, i32
  }
  func.func @transform_1(%arg0: i32) -> (i32, i32) {
    %c0_i32 = arith.constant 0 : i32
    %c0_i32_0 = arith.constant 0 : i32
    %c0_i32_1 = arith.constant 0 : i32
    return %c0_i32, %c0_i32_0 : i32, i32
  }
  func.func @transform_2(%arg0: i32) -> (i32, i32) {
    %c0_i32 = arith.constant 0 : i32
    %c0_i32_0 = arith.constant 0 : i32
    %c0_i32_1 = arith.constant 0 : i32
    return %c0_i32, %c0_i32_0 : i32, i32
  }
  func.func @transform_3(%arg0: i32) -> (i32, i32) {
    %c0_i32 = arith.constant 0 : i32
    %c0_i32_0 = arith.constant 0 : i32
    %c0_i32_1 = arith.constant 0 : i32
    return %c0_i32, %c0_i32_0 : i32, i32
  }
  func.func @transform_4(%arg0: i32) -> (i32, i32) {
    %c0_i32 = arith.constant 0 : i32
    %c0_i32_0 = arith.constant 0 : i32
    %c0_i32_1 = arith.constant 0 : i32
    return %c0_i32, %c0_i32_0 : i32, i32
  }
}

</mosaic_0001>

<llo_original>
// kernel: tpu_custom_call.1
$region0: #{tpu_custom_call.1}
  #allocation0 [shape = 'u32[]', space=smem, size = 0x4, offset = 0x4, fixed_abs, tag = 'smem constant byte address 0x4 - core index']
  #allocation1 [shape = 'u32[144,128]{1,0:T(1,128)}', space=vmem, size = 0x12000, scoped, tag = 'internal scratch']
  %s0 = inlined_call_operand.hbm [shape: bf16[64,64], index: 0, kind: input, shape index: {}]
  %s1 = inlined_call_operand.hbm [shape: bf16[64,128], index: 1, kind: input, shape index: {}]
  %s2 = inlined_call_operand.hbm [shape: bf16[128,128], index: 2, kind: input, shape index: {}]
  %s3 = inlined_call_operand.vmem [shape: f32[1,128], index: 3, kind: input, shape index: {}]
  %s4 = inlined_call_operand.hbm [shape: f32[64,128], index: 4, kind: output, shape index: {}]
  %s5 = sld [smem:[#allocation0]]
  $region38: #{tpu_custom_call.1} parent=0
    _
  %s7 = ssub.s32 1, %s5
  %s8 = scalar_select 0, %s7, %s5
  $region1: #{tpu_custom_call.1} parent=0
    #allocation2 [shape = 'u8[16384]{0}', space=vmem, size = 0x4000, scoped, tag = 'input window, operand 0, single buffered']
    #allocation3 [shape = 's32[1]{0}', space=sflag, size = 0x4, scoped, tag = 'scoped memory for tpu_custom_call.1']
    #allocation4 [shape = 's32[1]{0}', space=sflag, size = 0x4, scoped, tag = 'scoped memory for tpu_custom_call.1']
    #allocation5 [shape = 'u8[16384]{0}', space=vmem, size = 0x4000, scoped, tag = 'input window, operand 1, single buffered']
    #allocation6 [shape = 's32[1]{0}', space=sflag, size = 0x4, scoped, tag = 'scoped memory for tpu_custom_call.1']
    #allocation7 [shape = 'u8[32768]{0}', space=vmem, size = 0x8000, scoped, tag = 'input window, operand 2, single buffered']
    #allocation8 [shape = 'u8[32768]{0}', space=vmem, size = 0x8000, scoped, tag = 'output window, operand 0, single buffered']
    %9 = vsyncpa [#allocation3], 0
    %10 = vsyncpa [#allocation6], 0
    %11 = vsyncpa [#allocation4], 0
    // Predicated region
    $region2: #{tpu_custom_call.1} parent=1 // pred_check
      _
    $region3: #{tpu_custom_call.1} parent=1 // pred_check_branch
      %13 = sbr.rel (0) target = $region5
    $region4: #{tpu_custom_call.1} parent=1 // pred_region
      %s15 = ssub.s32 512, 512
      %16 = vsyncadd [#allocation3], %s15
      %s17 = sshll.u32 [#allocation2], 4
      %s18 = int_to_ptr.vmem [resolvable:$true] %s17
      %23 = dma.hbm_to_vmem [thread:$0]  %s0, 512, %s18, [#allocation3], 64, 64, 4
    $region5: #{tpu_custom_call.1} parent=1 // pred_fallthru
      _
    // Predicated region
    $region6: #{tpu_custom_call.1} parent=1 // pred_check
      _
    $region7: #{tpu_custom_call.1} parent=1 // pred_check_branch
      %25 = sbr.rel (0) target = $region9
    $region8: #{tpu_custom_call.1} parent=1 // pred_region
      %s27 = ssub.s32 512, 512
      %28 = vsyncadd [#allocation6], %s27
      %s29 = sshll.u32 [#allocation5], 4
      %s30 = int_to_ptr.vmem [resolvable:$true] %s29
      %35 = dma.hbm_to_vmem [thread:$0]  %s1, 512, %s30, [#allocation6], 64, 64, 4
    $region9: #{tpu_custom_call.1} parent=1 // pred_fallthru
      _
    // Predicated region
    $region10: #{tpu_custom_call.1} parent=1 // pred_check
      _
    $region11: #{tpu_custom_call.1} parent=1 // pred_check_branch
      %37 = sbr.rel (0) target = $region13
    $region12: #{tpu_custom_call.1} parent=1 // pred_region
      %s39 = ssub.s32 1024, 1024
      %40 = vsyncadd [#allocation6], %s39
      %s41 = sshll.u32 [#allocation7], 4
      %s42 = int_to_ptr.vmem [resolvable:$true] %s41
      %47 = dma.hbm_to_vmem [thread:$0]  %s2, 1024, %s42, [#allocation6], 64, 64, 4
    $region13: #{tpu_custom_call.1} parent=1 // pred_fallthru
      _
    // Predicated region
    $region14: #{tpu_custom_call.1} parent=1 // pred_check
      _
    $region15: #{tpu_custom_call.1} parent=1 // pred_check_branch
      %49 = sbr.rel (0) target = $region17
    $region16: #{tpu_custom_call.1} parent=1 // pred_region
      _
    $region17: #{tpu_custom_call.1} parent=1 // pred_fallthru
      _
    // Predicated region
    $region18: #{tpu_custom_call.1} parent=1 // pred_check
      _
    $region19: #{tpu_custom_call.1} parent=1 // pred_check_branch
      %51 = sbr.rel (0) target = $region21
    $region20: #{tpu_custom_call.1} parent=1 // pred_region
      %52 = dma.done [#allocation3], 512
    $region21: #{tpu_custom_call.1} parent=1 // pred_fallthru
      _
    // Predicated region
    $region22: #{tpu_custom_call.1} parent=1 // pred_check
      _
    $region23: #{tpu_custom_call.1} parent=1 // pred_check_branch
      %54 = sbr.rel (0) target = $region25
    $region24: #{tpu_custom_call.1} parent=1 // pred_region
      %55 = dma.done [#allocation6], 512
    $region25: #{tpu_custom_call.1} parent=1 // pred_fallthru
      _
    // Predicated region
    $region26: #{tpu_custom_call.1} parent=1 // pred_check
      _
    $region27: #{tpu_custom_call.1} parent=1 // pred_check_branch
      %57 = sbr.rel (0) target = $region29
    $region28: #{tpu_custom_call.1} parent=1 // pred_region
      %58 = dma.done [#allocation6], 1024
    $region29: #{tpu_custom_call.1} parent=1 // pred_fallthru
      _
    %v60 = vld [vmem:[#allocation2] sm:$0xf]
    %v61 = vld [vmem:[#allocation2 + $0x4] sm:$0xf]
    %v62 = vld [vmem:[#allocation2 + $0x8] sm:$0xf]
    %v63 = vld [vmem:[#allocation2 + $0xc] sm:$0xf]
    %v64 = vld [vmem:[#allocation2 + $0x10] sm:$0xf]
    %v65 = vld [vmem:[#allocation2 + $0x14] sm:$0xf]
    %v66 = vld [vmem:[#allocation2 + $0x18] sm:$0xf]
    %v67 = vld [vmem:[#allocation2 + $0x1c] sm:$0xf]
    %v68 = vld [vmem:[#allocation5] sm:$0xf]
    %v69 = vld [vmem:[#allocation5 + $0x4] sm:$0xf]
    %v70 = vld [vmem:[#allocation5 + $0x8] sm:$0xf]
    %v71 = vld [vmem:[#allocation5 + $0xc] sm:$0xf]
    %v72 = vld [vmem:[#allocation5 + $0x10] sm:$0xf]
    %v73 = vld [vmem:[#allocation5 + $0x14] sm:$0xf]
    %v74 = vld [vmem:[#allocation5 + $0x18] sm:$0xf]
    %v75 = vld [vmem:[#allocation5 + $0x1c] sm:$0xf]
    %v84 = vunpack.c.l.b16 %v60
    %v85 = vunpack.c.l.b16 %v61
    %v86 = vunpack.c.l.b16 %v62
    %v87 = vunpack.c.l.b16 %v63
    %v88 = vunpack.c.l.b16 %v64
    %v89 = vunpack.c.l.b16 %v65
    %v90 = vunpack.c.l.b16 %v66
    %v91 = vunpack.c.l.b16 %v67
    %v92 = vpack.c.b16 %v85, %v84
    %v93 = vpack.c.b16 %v87, %v86
    %v94 = vpack.c.b16 %v89, %v88
    %v95 = vpack.c.b16 %v91, %v90
    %v104 = vunpack.c.l.b16 %v68
    %v105 = vunpack.c.l.b16 %v69
    %v106 = vunpack.c.l.b16 %v70
    %v107 = vunpack.c.l.b16 %v71
    %v108 = vunpack.c.l.b16 %v72
    %v109 = vunpack.c.l.b16 %v73
    %v110 = vunpack.c.l.b16 %v74
    %v111 = vunpack.c.l.b16 %v75
    %v112 = vpack.c.b16 %v105, %v104
    %v113 = vpack.c.b16 %v107, %v106
    %v114 = vpack.c.b16 %v109, %v108
    %v115 = vpack.c.b16 %v111, %v110
    %vm120 = vcmask 523264
    %v122 = vsel %vm120, %v92, 0
    %v125 = vsel %vm120, %v93, 0
    %v128 = vsel %vm120, %v94, 0
    %v131 = vsel %vm120, %v95, 0
    %133 = vmatprep.subr.bf16.mxu0 0
    %134 = vmatpush1.bf16.msra.mxu0 0
    %135 = vmatprep.subr.bf16.mxu0 0
    %136 = vmatpush1.bf16.msra.mxu0 0
    %137 = vmatprep.subr.bf16.mxu0 0
    %138 = vmatpush1.bf16.msra.mxu0 0
    %139 = vmatprep.subr.bf16.mxu0 0
    %140 = vmatpush1.bf16.msra.mxu0 0
    %141 = vmatprep.subr.bf16.mxu0 0
    %142 = vmatpush1.bf16.msra.mxu0 %v115
    %143 = vmatprep.subr.bf16.mxu0 0
    %144 = vmatpush1.bf16.msra.mxu0 %v114
    %145 = vmatprep.subr.bf16.mxu0 0
    %146 = vmatpush1.bf16.msra.mxu0 %v113
    %147 = vmatprep.subr.bf16.mxu0 0
    %148 = vmatpush1.bf16.msra.mxu0 %v112
    %149 = vmatprep.subr.bf16.mxu0 0
    %150 = vmatpush2.bf16.msra.mxu0 0
    %151 = vmatprep.subr.bf16.mxu0 0
    %152 = vmatpush2.bf16.msra.mxu0 0
    %153 = vmatprep.subr.bf16.mxu0 0
    %154 = vmatpush2.bf16.msra.mxu0 0
    %155 = vmatprep.subr.bf16.mxu0 0
    %156 = vmatpush2.bf16.msra.mxu0 0
    %157 = vmatprep.subr.bf16.mxu0 0
    %158 = vmatpush2.bf16.msra.mxu0 0
    %159 = vmatprep.subr.bf16.mxu0 0
    %160 = vmatpush2.bf16.msra.mxu0 0
    %161 = vmatprep.subr.bf16.mxu0 0
    %162 = vmatpush2.bf16.msra.mxu0 0
    %163 = vmatprep.subr.bf16.mxu0 0
    %164 = vmatpush2.bf16.msra.mxu0 0
    %165 = vmatprep.mubr.bf16.mxu0 0
    %166 = vmatmul.mubr.bf16.gmra.mxu0 %v122
    %v167 = vpop.f32.mrf.mxu0
    %v168 = vadd.f32 0.0, %v167
    %v169 = vpop.f32.mrf.mxu0
    %v170 = vpop.f32.mrf.mxu0
    %v171 = vadd.f32 0.0, %v170
    %v172 = vpop.f32.mrf.mxu0
    %173 = vmatprep.mubr.bf16.mxu0 0
    %174 = vmatmul.mubr.bf16.gmra.mxu0 %v125
    %v175 = vpop.f32.mrf.mxu0
    %v176 = vadd.f32 0.0, %v175
    %v177 = vpop.f32.mrf.mxu0
    %v178 = vpop.f32.mrf.mxu0
    %v179 = vadd.f32 0.0, %v178
    %v180 = vpop.f32.mrf.mxu0
    %181 = vmatprep.mubr.bf16.mxu0 0
    %182 = vmatmul.mubr.bf16.gmra.mxu0 %v128
    %v183 = vpop.f32.mrf.mxu0
    %v184 = vadd.f32 0.0, %v183
    %v185 = vpop.f32.mrf.mxu0
    %v186 = vpop.f32.mrf.mxu0
    %v187 = vadd.f32 0.0, %v186
    %v188 = vpop.f32.mrf.mxu0
    %189 = vmatprep.mubr.bf16.mxu0 0
    %190 = vmatmul.mubr.bf16.gmra.mxu0 %v131
    %v191 = vpop.f32.mrf.mxu0
    %v192 = vadd.f32 0.0, %v191
    %v193 = vpop.f32.mrf.mxu0
    %v194 = vpop.f32.mrf.mxu0
    %v195 = vadd.f32 0.0, %v194
    %v196 = vpop.f32.mrf.mxu0
    %197 = vdwg.mxu0
    %v198 = vpack.c.bf16 %v171, %v168
    %v199 = vpack.c.bf16 %v179, %v176
    %v200 = vpack.c.bf16 %v187, %v184
    %v201 = vpack.c.bf16 %v195, %v192
    %v202 = vld [vmem:[#allocation7] sm:$0xf]
    %v203 = vld [vmem:[#allocation7 + $0x4] sm:$0xf]
    %v204 = vld [vmem:[#allocation7 + $0x8] sm:$0xf]
    %v205 = vld [vmem:[#allocation7 + $0xc] sm:$0xf]
    %v206 = vld [vmem:[#allocation7 + $0x10] sm:$0xf]
    %v207 = vld [vmem:[#allocation7 + $0x14] sm:$0xf]
    %v208 = vld [vmem:[#allocation7 + $0x18] sm:$0xf]
    %v209 = vld [vmem:[#allocation7 + $0x1c] sm:$0xf]
    %v210 = vld [vmem:[#allocation7 + $0x20] sm:$0xf]
    %v211 = vld [vmem:[#allocation7 + $0x24] sm:$0xf]
    %v212 = vld [vmem:[#allocation7 + $0x28] sm:$0xf]
    %v213 = vld [vmem:[#allocation7 + $0x2c] sm:$0xf]
    %v214 = vld [vmem:[#allocation7 + $0x30] sm:$0xf]
    %v215 = vld [vmem:[#allocation7 + $0x34] sm:$0xf]
    %v216 = vld [vmem:[#allocation7 + $0x38] sm:$0xf]
    %v217 = vld [vmem:[#allocation7 + $0x3c] sm:$0xf]
    %v218 = vld [vmem:[%s3] sm:$0x1]
    %v220 = vlaneseq
    %v221 = vshrl.u32 %v220, 7
    %v222 = vsub.s32 0, %v221
    %v223 = vrot.slane %v218, %v222
    %v241 = vunpack.c.l.b16 %v202
    %v242 = vunpack.c.l.b16 %v203
    %v243 = vunpack.c.l.b16 %v204
    %v244 = vunpack.c.l.b16 %v205
    %v245 = vunpack.c.l.b16 %v206
    %v246 = vunpack.c.l.b16 %v207
    %v247 = vunpack.c.l.b16 %v208
    %v248 = vunpack.c.l.b16 %v209
    %v249 = vunpack.c.l.b16 %v210
    %v250 = vunpack.c.l.b16 %v211
    %v251 = vunpack.c.l.b16 %v212
    %v252 = vunpack.c.l.b16 %v213
    %v253 = vunpack.c.l.b16 %v214
    %v254 = vunpack.c.l.b16 %v215
    %v255 = vunpack.c.l.b16 %v216
    %v256 = vunpack.c.l.b16 %v217
    %v257 = vpack.c.b16 %v242, %v241
    %v258 = vpack.c.b16 %v244, %v243
    %v259 = vpack.c.b16 %v246, %v245
    %v260 = vpack.c.b16 %v248, %v247
    %v261 = vpack.c.b16 %v250, %v249
    %v262 = vpack.c.b16 %v252, %v251
    %v263 = vpack.c.b16 %v254, %v253
    %v264 = vpack.c.b16 %v256, %v255
    %273 = vmatprep.subr.bf16.mxu0 0
    %274 = vmatpush1.bf16.msra.mxu0 %v264
    %275 = vmatprep.subr.bf16.mxu0 0
    %276 = vmatpush1.bf16.msra.mxu0 %v263
    %277 = vmatprep.subr.bf16.mxu0 0
    %278 = vmatpush1.bf16.msra.mxu0 %v262
    %279 = vmatprep.subr.bf16.mxu0 0
    %280 = vmatpush1.bf16.msra.mxu0 %v261
    %281 = vmatprep.subr.bf16.mxu0 0
    %282 = vmatpush1.bf16.msra.mxu0 %v260
    %283 = vmatprep.subr.bf16.mxu0 0
    %284 = vmatpush1.bf16.msra.mxu0 %v259
    %285 = vmatprep.subr.bf16.mxu0 0
    %286 = vmatpush1.bf16.msra.mxu0 %v258
    %287 = vmatprep.subr.bf16.mxu0 0
    %288 = vmatpush1.bf16.msra.mxu0 %v257
    %289 = vmatprep.subr.bf16.mxu0 0
    %290 = vmatpush2.bf16.msra.mxu0 0
    %291 = vmatprep.subr.bf16.mxu0 0
    %292 = vmatpush2.bf16.msra.mxu0 0
    %293 = vmatprep.subr.bf16.mxu0 0
    %294 = vmatpush2.bf16.msra.mxu0 0
    %295 = vmatprep.subr.bf16.mxu0 0
    %296 = vmatpush2.bf16.msra.mxu0 0
    %297 = vmatprep.subr.bf16.mxu0 0
    %298 = vmatpush2.bf16.msra.mxu0 0
    %299 = vmatprep.subr.bf16.mxu0 0
    %300 = vmatpush2.bf16.msra.mxu0 0
    %301 = vmatprep.subr.bf16.mxu0 0
    %302 = vmatpush2.bf16.msra.mxu0 0
    %303 = vmatprep.subr.bf16.mxu0 0
    %304 = vmatpush2.bf16.msra.mxu0 0
    %305 = vmatprep.mubr.bf16.mxu0 0
    %306 = vmatmul.mubr.bf16.gmra.mxu0 %v198
    %v307 = vpop.f32.mrf.mxu0
    %v308 = vadd.f32 %v223, %v307
    %v309 = vpop.f32.mrf.mxu0
    %v310 = vpop.f32.mrf.mxu0
    %v311 = vadd.f32 %v223, %v310
    %v312 = vpop.f32.mrf.mxu0
    %313 = vmatprep.mubr.bf16.mxu0 0
    %314 = vmatmul.mubr.bf16.gmra.mxu0 %v199
    %v315 = vpop.f32.mrf.mxu0
    %v316 = vadd.f32 %v223, %v315
    %v317 = vpop.f32.mrf.mxu0
    %v318 = vpop.f32.mrf.mxu0
    %v319 = vadd.f32 %v223, %v318
    %v320 = vpop.f32.mrf.mxu0
    %321 = vmatprep.mubr.bf16.mxu0 0
    %322 = vmatmul.mubr.bf16.gmra.mxu0 %v200
    %v323 = vpop.f32.mrf.mxu0
    %v324 = vadd.f32 %v223, %v323
    %v325 = vpop.f32.mrf.mxu0
    %v326 = vpop.f32.mrf.mxu0
    %v327 = vadd.f32 %v223, %v326
    %v328 = vpop.f32.mrf.mxu0
    %329 = vmatprep.mubr.bf16.mxu0 0
    %330 = vmatmul.mubr.bf16.gmra.mxu0 %v201
    %v331 = vpop.f32.mrf.mxu0
    %v332 = vadd.f32 %v223, %v331
    %v333 = vpop.f32.mrf.mxu0
    %v334 = vpop.f32.mrf.mxu0
    %v335 = vadd.f32 %v223, %v334
    %v336 = vpop.f32.mrf.mxu0
    %337 = vdwg.mxu0
    %v338 = vmax.f32 %v308, 0.0
    %v339 = vmax.f32 %v311, 0.0
    %v340 = vmax.f32 %v316, 0.0
    %v341 = vmax.f32 %v319, 0.0
    %v342 = vmax.f32 %v324, 0.0
    %v343 = vmax.f32 %v327, 0.0
    %v344 = vmax.f32 %v332, 0.0
    %v345 = vmax.f32 %v335, 0.0
    %346 = vst [vmem:[#allocation8] sm:$0xff] %v338
    %347 = vst [vmem:[#allocation8 + $0x8] sm:$0xff] %v339
    %348 = vst [vmem:[#allocation8 + $0x10] sm:$0xff] %v340
    %349 = vst [vmem:[#allocation8 + $0x18] sm:$0xff] %v341
    %350 = vst [vmem:[#allocation8 + $0x20] sm:$0xff] %v342
    %351 = vst [vmem:[#allocation8 + $0x28] sm:$0xff] %v343
    %352 = vst [vmem:[#allocation8 + $0x30] sm:$0xff] %v344
    %353 = vst [vmem:[#allocation8 + $0x38] sm:$0xff] %v345
    // Predicated region
    $region30: #{tpu_custom_call.1} parent=1 // pred_check
      _
    $region31: #{tpu_custom_call.1} parent=1 // pred_check_branch
      %355 = sbr.rel (0) target = $region33
    $region32: #{tpu_custom_call.1} parent=1 // pred_region
      %s357 = ssub.s32 1024, 1024
      %358 = vsyncadd [#allocation4], %s357
      %s359 = sshll.u32 [#allocation8], 4
      %s360 = int_to_ptr.vmem [resolvable:$true] %s359
      %365 = dma.vmem_to_hbm [thread:$0]  %s360, 1024, %s4, [#allocation4], 128, 128, 8
    $region33: #{tpu_custom_call.1} parent=1 // pred_fallthru
      _
    // Predicated region
    $region34: #{tpu_custom_call.1} parent=1 // pred_check
      _
    $region35: #{tpu_custom_call.1} parent=1 // pred_check_branch
      %367 = sbr.rel (0) target = $region37
    $region36: #{tpu_custom_call.1} parent=1 // pred_region
      %368 = dma.done [#allocation4], 1024
    $region37: #{tpu_custom_call.1} parent=1 // pred_fallthru
      _
    %369 = vsyncpa [#allocation3], 1
    %370 = vsyncpa [#allocation6], 1
    %371 = vsyncpa [#allocation4], 1

</llo_original>
